<compile_context>
chip_gen: v7x
topology: tpu7x:2x2x1
jax: 0.10.0
libtpu: 0.0.40
codegen_flags: <defaults>
</compile_context>

<pallas_src>
import math
import functools

import jax
import jax.numpy as jnp
from jax.experimental import pallas as pl
from jax.experimental.pallas import tpu as pltpu


# ----------------------------- in-kernel helpers -----------------------------

def _layernorm(x, w, b, eps=1e-5):
    # stats in f32 regardless of input dtype (matches PyTorch LayerNorm, eps=1e-5)
    xf = x.astype(jnp.float32)
    mu = jnp.mean(xf, axis=-1, keepdims=True)
    xc = xf - mu
    var = jnp.mean(xc * xc, axis=-1, keepdims=True)
    inv = jax.lax.rsqrt(var + eps)
    return xc * inv * w.astype(jnp.float32) + b.astype(jnp.float32)


def _gelu_tanh(x):
    # GELU(approximate='tanh'), computed in f32
    xf = x.astype(jnp.float32)
    c = math.sqrt(2.0 / math.pi)
    return 0.5 * xf * (1.0 + jnp.tanh(c * (xf + 0.044715 * xf * xf * xf)))


# ------------------------ kernel 1: ln_1 + QKV projection ---------------------

def _ln_qkv_kernel(x_ref, ln1w_ref, ln1b_ref, wqkv_ref, bqkv_ref, qkv_ref):
    h = _layernorm(x_ref[0], ln1w_ref[...], ln1b_ref[...]).astype(x_ref.dtype)
    qkv = jnp.dot(h, wqkv_ref[...], preferred_element_type=jnp.float32)
    qkv_ref[0] = (qkv + bqkv_ref[...].astype(jnp.float32)).astype(qkv_ref.dtype)


# ----------- kernel 2: flash causal attention + c_proj + residual -------------

def _flash_attn_kernel(scale, x_ref, q_ref, k_ref, v_ref, wpr_ref, bpr_ref,
                       o_ref, m_sc, l_sc, acc_sc):
    qi = pl.program_id(1)
    ki = pl.program_id(2)
    tq = q_ref.shape[2]
    tk = k_ref.shape[2]

    @pl.when(ki == 0)
    def _init():
        m_sc[...] = jnp.full_like(m_sc, -jnp.inf)
        l_sc[...] = jnp.zeros_like(l_sc)
        acc_sc[...] = jnp.zeros_like(acc_sc)

    # Skip key tiles that lie entirely in the causal future of this query tile.
    @pl.when(ki * tk <= qi * tq + (tq - 1))
    def _compute():
        q = q_ref[0]                       # (H, tq, hd)
        k = k_ref[0]                       # (H, tk, hd)
        v = v_ref[0]                       # (H, tk, hd)

        # Batched-over-heads QK^T; the transpose is absorbed into dot_general.
        s = jnp.einsum('hqd,hkd->hqk', q, k,
                       preferred_element_type=jnp.float32) * scale

        # Per-tile causal mask (small iotas; large finite negative => no NaNs).
        rows = qi * tq + jax.lax.broadcasted_iota(jnp.int32, s.shape, 1)
        cols = ki * tk + jax.lax.broadcasted_iota(jnp.int32, s.shape, 2)
        s = jnp.where(rows >= cols, s, -1e30)

        m_prev = m_sc[...]                                            # (H, tq, 1)
        m_new = jnp.maximum(m_prev, jnp.max(s, axis=-1, keepdims=True))
        alpha = jnp.exp(m_prev - m_new)
        p = jnp.exp(s - m_new)
        l_sc[...] = alpha * l_sc[...] + jnp.sum(p, axis=-1, keepdims=True)
        acc_sc[...] = (alpha * acc_sc[...]
                       + jnp.einsum('hqk,hkd->hqd', p.astype(v.dtype), v,
                                    preferred_element_type=jnp.float32))
        m_sc[...] = m_new

    @pl.when(ki == pl.num_programs(2) - 1)
    def _finalize():
        inv_l = pl.reciprocal(l_sc[...], approx=True)                 # (H, tq, 1)
        y_h = acc_sc[...] * inv_l                                     # (H, tq, hd)
        # Output projection without any head transpose / concat:
        #   y @ Wproj == sum_h  y_h[h] @ Wproj[h*hd:(h+1)*hd, :]
        yc = jnp.einsum('hqd,hdc->hqc', y_h.astype(wpr_ref.dtype), wpr_ref[...],
                        preferred_element_type=jnp.float32)           # (H, tq, C)
        y = jnp.sum(yc, axis=0) + bpr_ref[...].astype(jnp.float32)    # (tq, C)
        o_ref[0] = (x_ref[0].astype(jnp.float32) + y).astype(o_ref.dtype)


# --------- kernel 3: ln_2 + MLP (hidden-dim tiled) + residual -----------------

def _ln_mlp_kernel(x_ref, ln2w_ref, ln2b_ref, wfc_ref, bfc_ref, wp2_ref,
                   bp2_ref, o_ref, acc_sc, h_sc):
    j = pl.program_id(2)

    @pl.when(j == 0)
    def _init():
        acc_sc[...] = jnp.zeros_like(acc_sc)
        h_sc[...] = _layernorm(x_ref[0], ln2w_ref[...], ln2b_ref[...])

    # One column tile of the 4C hidden dim: c_fc -> GELU -> accumulate c_proj.
    h = h_sc[...].astype(x_ref.dtype)
    hfc = (jnp.dot(h, wfc_ref[...], preferred_element_type=jnp.float32)
           + bfc_ref[...].astype(jnp.float32))
    hfc = _gelu_tanh(hfc).astype(x_ref.dtype)
    acc_sc[...] += jnp.dot(hfc, wp2_ref[...], preferred_element_type=jnp.float32)

    @pl.when(j == pl.num_programs(2) - 1)
    def _finalize():
        o_ref[0] = (x_ref[0].astype(jnp.float32) + acc_sc[...]
                    + bp2_ref[...].astype(jnp.float32)).astype(o_ref.dtype)


# --------------------------------- wrapper ------------------------------------

def gpt2_block(x, params, n_head, *, block_t=128, block_h=512):
    (ln1w, ln1b, wqkv, bqkv, wpr, bpr,
     ln2w, ln2b, wfc, bfc, wp2, bp2) = params
    B, T, C = x.shape
    assert C % n_head == 0
    hd = C // n_head
    H4 = 4 * C

    tq = min(block_t, T)                 # seq tile (used for both q and k tiles)
    assert T % tq == 0, "T must be divisible by the sequence tile"
    nT = T // tq

    th = min(block_h, H4)                # MLP hidden tile
    assert H4 % th == 0, "4*C must be divisible by the hidden tile"
    nH = H4 // th

    vmem_cap = 64 * 1024 * 1024
    cp2 = pltpu.CompilerParams(
        dimension_semantics=("parallel", "parallel", "arbitrary"),
        vmem_limit_bytes=vmem_cap)
    cp1 = pltpu.CompilerParams(
        dimension_semantics=("parallel", "parallel"),
        vmem_limit_bytes=vmem_cap)

    # ---- kernel 1: qkv = ln_1(x) @ Wqkv + b --------------------------------
    qkv = pl.pallas_call(
        _ln_qkv_kernel,
        out_shape=jax.ShapeDtypeStruct((B, T, 3 * C), x.dtype),
        grid=(B, nT),
        in_specs=[
            pl.BlockSpec((1, tq, C), lambda b, i: (b, i, 0)),
            pl.BlockSpec((1, C), lambda b, i: (0, 0)),
            pl.BlockSpec((1, C), lambda b, i: (0, 0)),
            pl.BlockSpec((C, 3 * C), lambda b, i: (0, 0)),
            pl.BlockSpec((1, 3 * C), lambda b, i: (0, 0)),
        ],
        out_specs=pl.BlockSpec((1, tq, 3 * C), lambda b, i: (b, i, 0)),
        compiler_params=cp1,
    )(x, ln1w, ln1b, wqkv, bqkv)

    # Layout plumbing in plain XLA (cheap): present lane-aligned per-head
    # (B, H, T, hd) blocks so the attention kernel never slices / reshapes /
    # concatenates heads in-kernel.
    qkv5 = qkv.reshape(B, T, 3, n_head, hd).transpose(2, 0, 3, 1, 4)
    q, k, v = qkv5[0], qkv5[1], qkv5[2]          # each (B, H, T, hd)
    wpr3 = wpr.reshape(n_head, hd, C)            # per-head row blocks of c_proj

    scale = 1.0 / math.sqrt(hd)

    # ---- kernel 2: x = x + c_proj(causal_flash_attention(q, k, v)) ---------
    x_attn = pl.pallas_call(
        functools.partial(_flash_attn_kernel, scale),
        out_shape=jax.ShapeDtypeStruct((B, T, C), x.dtype),
        grid=(B, nT, nT),
        in_specs=[
            pl.BlockSpec((1, tq, C), lambda b, qi, ki: (b, qi, 0)),      # residual
            pl.BlockSpec((1, n_head, tq, hd),
                         lambda b, qi, ki: (b, 0, qi, 0)),               # q
            pl.BlockSpec((1, n_head, tq, hd),                            # k (clamp:
                         lambda b, qi, ki: (b, 0, jnp.minimum(ki, qi), 0)),  # skip DMA
            pl.BlockSpec((1, n_head, tq, hd),                            # of fully-
                         lambda b, qi, ki: (b, 0, jnp.minimum(ki, qi), 0)),  # masked tiles)
            pl.BlockSpec((n_head, hd, C), lambda b, qi, ki: (0, 0, 0)),  # Wproj (per-head)
            pl.BlockSpec((1, C), lambda b, qi, ki: (0, 0)),              # bproj
        ],
        out_specs=pl.BlockSpec((1, tq, C), lambda b, qi, ki: (b, qi, 0)),
        scratch_shapes=[
            pltpu.VMEM((n_head, tq, 1), jnp.float32),    # running max
            pltpu.VMEM((n_head, tq, 1), jnp.float32),    # running denominator
            pltpu.VMEM((n_head, tq, hd), jnp.float32),   # running numerator
        ],
        compiler_params=cp2,
    )(x, q, k, v, wpr3, bpr)

    # ---- kernel 3: x = x + c_proj(gelu(c_fc(ln_2(x)))) ---------------------
    out = pl.pallas_call(
        _ln_mlp_kernel,
        out_shape=jax.ShapeDtypeStruct((B, T, C), x.dtype),
        grid=(B, nT, nH),
        in_specs=[
            pl.BlockSpec((1, tq, C), lambda b, i, j: (b, i, 0)),
            pl.BlockSpec((1, C), lambda b, i, j: (0, 0)),
            pl.BlockSpec((1, C), lambda b, i, j: (0, 0)),
            pl.BlockSpec((C, th), lambda b, i, j: (0, j)),   # c_fc col tile
            pl.BlockSpec((1, th), lambda b, i, j: (0, j)),
            pl.BlockSpec((th, C), lambda b, i, j: (j, 0)),   # c_proj row tile
            pl.BlockSpec((1, C), lambda b, i, j: (0, 0)),
        ],
        out_specs=pl.BlockSpec((1, tq, C), lambda b, i, j: (b, i, 0)),
        scratch_shapes=[
            pltpu.VMEM((tq, C), jnp.float32),   # c_proj accumulator
            pltpu.VMEM((tq, C), jnp.float32),   # cached ln_2 activations
        ],
        compiler_params=cp2,
    )(x_attn, ln2w, ln2b, wfc, bfc, wp2, bp2)

    return out


# --------------------------- deterministic init -------------------------------

def init_params(key, n_embd):
    C = n_embd
    ks = jax.random.split(key, 6)
    std = 0.02
    ln1w = jnp.ones((1, C), jnp.float32)
    ln1b = jnp.zeros((1, C), jnp.float32)
    ln2w = jnp.ones((1, C), jnp.float32)
    ln2b = jnp.zeros((1, C), jnp.float32)
    # Linear weights stored as (in, out); biases as (1, out).
    wqkv = std * jax.random.normal(ks[0], (C, 3 * C), jnp.float32)
    bqkv = std * jax.random.normal(ks[1], (1, 3 * C), jnp.float32)
    wpr = std * jax.random.normal(ks[2], (C, C), jnp.float32)
    bpr = std * jax.random.normal(ks[3], (1, C), jnp.float32)
    wfc = std * jax.random.normal(ks[4], (C, 4 * C), jnp.float32)
    bfc = std * jax.random.normal(ks[5], (1, 4 * C), jnp.float32)
    wp2 = std * jax.random.normal(jax.random.fold_in(key, 7), (4 * C, C), jnp.float32)
    bp2 = std * jax.random.normal(jax.random.fold_in(key, 8), (1, C), jnp.float32)
    return (ln1w, ln1b, wqkv, bqkv, wpr, bpr, ln2w, ln2b, wfc, bfc, wp2, bp2)


# ------------------------------ pure-JAX reference -----------------------------

def _reference_block(x, params, n_head):
    (ln1w, ln1b, wqkv, bqkv, wpr, bpr, ln2w, ln2b, wfc, bfc, wp2, bp2) = params
    B, T, C = x.shape
    hd = C // n_head

    def ln(z, w, b):
        mu = z.mean(-1, keepdims=True)
        var = ((z - mu) ** 2).mean(-1, keepdims=True)
        return (z - mu) * jax.lax.rsqrt(var + 1e-5) * w + b

    qkv = ln(x, ln1w, ln1b) @ wqkv + bqkv
    q, k, v = jnp.split(qkv, 3, axis=-1)
    q = q.reshape(B, T, n_head, hd).transpose(0, 2, 1, 3)
    k = k.reshape(B, T, n_head, hd).transpose(0, 2, 1, 3)
    v = v.reshape(B, T, n_head, hd).transpose(0, 2, 1, 3)
    s = (q @ k.transpose(0, 1, 3, 2)) / math.sqrt(hd)
    mask = jnp.tril(jnp.ones((T, T), bool))
    s = jnp.where(mask, s, -jnp.inf)
    y = (jax.nn.softmax(s, axis=-1) @ v).transpose(0, 2, 1, 3).reshape(B, T, C)
    x = x + y @ wpr + bpr
    h = ln(x, ln2w, ln2b) @ wfc + bfc
    h = 0.5 * h * (1.0 + jnp.tanh(math.sqrt(2.0 / math.pi) * (h + 0.044715 * h ** 3)))
    return x + h @ wp2 + bp2


if __name__ == "__main__":
    B, T, C, n_head = 2, 8, 32, 4
    key = jax.random.PRNGKey(0)
    kx, kp = jax.random.split(key)
    x = jax.random.normal(kx, (B, T, C), jnp.float32)
    params = init_params(kp, C)

    out = jax.block_until_ready(gpt2_block(x, params, n_head))

    assert out.shape == (B, T, C)
    assert bool(jnp.all(jnp.isfinite(out)))

    ref = _reference_block(x, params, n_head)
    assert bool(jnp.allclose(out, ref, atol=2e-2, rtol=2e-2))

    print("KERNEL_OK")
</pallas_src>

<mosaic_0001>
module attributes {stable_mosaic.version = 11 : i64} {
  func.func @_ln_qkv_kernel(%arg0: i32, %arg1: i32, %arg2: memref<1x8x32xf32, #tpu.memory_space<vmem>>, %arg3: memref<1x32xf32, #tpu.memory_space<vmem>>, %arg4: memref<1x32xf32, #tpu.memory_space<vmem>>, %arg5: memref<32x96xf32, #tpu.memory_space<vmem>>, %arg6: memref<1x96xf32, #tpu.memory_space<vmem>>, %arg7: memref<1x8x96xf32, #tpu.memory_space<vmem>>) attributes {dimension_semantics = [#tpu.dimension_semantics<parallel>, #tpu.dimension_semantics<parallel>], iteration_bounds = array<i64: 2, 1>, scalar_prefetch = 0 : i64, scratch_operands = 0 : i64, tpu.core_type = #tpu.core_type<tc>, window_params = [{transform_indices = @transform_0, window_bounds = array<i64: 1, 8, 32>}, {pipeline_mode = #tpu.pipeline_mode<synchronous>, transform_indices = @transform_1, window_bounds = array<i64: 1, 32>}, {pipeline_mode = #tpu.pipeline_mode<synchronous>, transform_indices = @transform_2, window_bounds = array<i64: 1, 32>}, {pipeline_mode = #tpu.pipeline_mode<synchronous>, transform_indices = @transform_3, window_bounds = array<i64: 32, 96>}, {pipeline_mode = #tpu.pipeline_mode<synchronous>, transform_indices = @transform_4, window_bounds = array<i64: 1, 96>}, {transform_indices = @transform_5, window_bounds = array<i64: 1, 8, 96>}]} {
    %c0 = arith.constant 0 : index
    %c0_0 = arith.constant 0 : index
    %c0_1 = arith.constant 0 : index
    %0 = vector.load %arg2[%c0, %c0_0, %c0_1] : memref<1x8x32xf32, #tpu.memory_space<vmem>>, vector<1x8x32xf32>
    %1 = vector.shape_cast %0 : vector<1x8x32xf32> to vector<8x32xf32>
    %c0_2 = arith.constant 0 : index
    %c0_3 = arith.constant 0 : index
    %2 = vector.load %arg3[%c0_2, %c0_3] : memref<1x32xf32, #tpu.memory_space<vmem>>, vector<1x32xf32>
    %c0_4 = arith.constant 0 : index
    %c0_5 = arith.constant 0 : index
    %3 = vector.load %arg4[%c0_4, %c0_5] : memref<1x32xf32, #tpu.memory_space<vmem>>, vector<1x32xf32>
    %cst = arith.constant dense<0.000000e+00> : vector<8xf32>
    %4 = vector.multi_reduction <add>, %1, %cst [1] : vector<8x32xf32> to vector<8xf32>
    %5 = vector.shape_cast %4 : vector<8xf32> to vector<8x1xf32>
    %cst_6 = arith.constant 3.200000e+01 : f32
    %6 = vector.broadcast %cst_6 : f32 to vector<8x1xf32>
    %7 = arith.divf %5, %6 : vector<8x1xf32>
    %8 = vector.broadcast %7 : vector<8x1xf32> to vector<8x32xf32>
    %9 = arith.subf %1, %8 : vector<8x32xf32>
    %10 = arith.mulf %9, %9 : vector<8x32xf32>
    %cst_7 = arith.constant dense<0.000000e+00> : vector<8xf32>
    %11 = vector.multi_reduction <add>, %10, %cst_7 [1] : vector<8x32xf32> to vector<8xf32>
    %12 = vector.shape_cast %11 : vector<8xf32> to vector<8x1xf32>
    %cst_8 = arith.constant 3.200000e+01 : f32
    %13 = vector.broadcast %cst_8 : f32 to vector<8x1xf32>
    %14 = arith.divf %12, %13 : vector<8x1xf32>
    %cst_9 = arith.constant 9.99999974E-6 : f32
    %15 = vector.broadcast %cst_9 : f32 to vector<8x1xf32>
    %16 = arith.addf %14, %15 : vector<8x1xf32>
    %17 = math.rsqrt %16 : vector<8x1xf32>
    %18 = vector.broadcast %17 : vector<8x1xf32> to vector<8x32xf32>
    %19 = arith.mulf %9, %18 : vector<8x32xf32>
    %20 = vector.broadcast %2 : vector<1x32xf32> to vector<8x32xf32>
    %21 = arith.mulf %19, %20 : vector<8x32xf32>
    %22 = vector.broadcast %3 : vector<1x32xf32> to vector<8x32xf32>
    %23 = arith.addf %21, %22 : vector<8x32xf32>
    %c0_10 = arith.constant 0 : index
    %c0_11 = arith.constant 0 : index
    %24 = vector.load %arg5[%c0_10, %c0_11] : memref<32x96xf32, #tpu.memory_space<vmem>>, vector<32x96xf32>
    %cst_12 = arith.constant dense<0.000000e+00> : vector<8x96xf32>
    %25 = tpu.matmul %23, %24, %cst_12 {dimension_numbers = #tpu.dot_dimension_numbers<[1], [0], [0], [1], [0, 0, 1, 1], [], []>} : vector<8x32xf32>, vector<32x96xf32>, vector<8x96xf32> -> vector<8x96xf32>
    %c0_13 = arith.constant 0 : index
    %c0_14 = arith.constant 0 : index
    %26 = vector.load %arg6[%c0_13, %c0_14] : memref<1x96xf32, #tpu.memory_space<vmem>>, vector<1x96xf32>
    %27 = vector.broadcast %26 : vector<1x96xf32> to vector<8x96xf32>
    %28 = arith.addf %25, %27 : vector<8x96xf32>
    %c0_15 = arith.constant 0 : index
    %c0_16 = arith.constant 0 : index
    %c0_17 = arith.constant 0 : index
    %29 = vector.load %arg7[%c0_15, %c0_16, %c0_17] : memref<1x8x96xf32, #tpu.memory_space<vmem>>, vector<1x8x96xf32>
    %30 = vector.shape_cast %29 : vector<1x8x96xf32> to vector<8x96xf32>
    %31 = vector.shape_cast %28 : vector<8x96xf32> to vector<1x8x96xf32>
    tpu.vector_store %arg7[%c0_15, %c0_16, %c0_17], %31 {strides = array<i32>} : memref<1x8x96xf32, #tpu.memory_space<vmem>>, vector<1x8x96xf32>,
    return
  }
  func.func @transform_0(%arg0: i32, %arg1: i32) -> (i32, i32, i32) {
    %c0_i32 = arith.constant 0 : i32
    %c0_i32_0 = arith.constant 0 : i32
    return %arg0, %arg1, %c0_i32 : i32, i32, i32
  }
  func.func @transform_1(%arg0: i32, %arg1: i32) -> (i32, i32) {
    %c0_i32 = arith.constant 0 : i32
    %c0_i32_0 = arith.constant 0 : i32
    %c0_i32_1 = arith.constant 0 : i32
    return %c0_i32, %c0_i32_0 : i32, i32
  }
  func.func @transform_2(%arg0: i32, %arg1: i32) -> (i32, i32) {
    %c0_i32 = arith.constant 0 : i32
    %c0_i32_0 = arith.constant 0 : i32
    %c0_i32_1 = arith.constant 0 : i32
    return %c0_i32, %c0_i32_0 : i32, i32
  }
  func.func @transform_3(%arg0: i32, %arg1: i32) -> (i32, i32) {
    %c0_i32 = arith.constant 0 : i32
    %c0_i32_0 = arith.constant 0 : i32
    %c0_i32_1 = arith.constant 0 : i32
    return %c0_i32, %c0_i32_0 : i32, i32
  }
  func.func @transform_4(%arg0: i32, %arg1: i32) -> (i32, i32) {
    %c0_i32 = arith.constant 0 : i32
    %c0_i32_0 = arith.constant 0 : i32
    %c0_i32_1 = arith.constant 0 : i32
    return %c0_i32, %c0_i32_0 : i32, i32
  }
  func.func @transform_5(%arg0: i32, %arg1: i32) -> (i32, i32, i32) {
    %c0_i32 = arith.constant 0 : i32
    %c0_i32_0 = arith.constant 0 : i32
    return %arg0, %arg1, %c0_i32 : i32, i32, i32
  }
}

</mosaic_0001>

<llo_original>
// kernel: tpu_custom_call.1
$region0: #{tpu_custom_call.1}
  #allocation0 [shape = 'u32[]', space=smem, size = 0x4, offset = 0x4, fixed_abs, tag = 'smem constant byte address 0x4 - core index']
  #allocation1 [shape = 'u32[144,128]{1,0:T(1,128)}', space=vmem, size = 0x12000, scoped, tag = 'internal scratch']
  %s0 = inlined_call_operand.hbm [shape: f32[2,8,32], index: 0, kind: input, shape index: {}]
  %s1 = inlined_call_operand.hbm [shape: f32[1,32], index: 1, kind: input, shape index: {}]
  %s2 = inlined_call_operand.hbm [shape: f32[1,32], index: 2, kind: input, shape index: {}]
  %s3 = inlined_call_operand.hbm [shape: f32[32,96], index: 3, kind: input, shape index: {}]
  %s4 = inlined_call_operand.hbm [shape: f32[1,96], index: 4, kind: input, shape index: {}]
  %s5 = inlined_call_operand.hbm [shape: f32[2,8,96], index: 5, kind: output, shape index: {}]
  %s6 = sld [smem:[#allocation0]]
  $region73: #{tpu_custom_call.1} parent=0
    _
  %s8 = ssub.s32 1, %s6
  %s9 = scalar_select 0, %s8, %s6
  $region1: #{tpu_custom_call.1} parent=0
    #allocation2 [shape = 'u8[8192]{0}', space=vmem, size = 0x2000, scoped, tag = 'input window, operand 0']
    #allocation3 [shape = 's32[2]{0}', space=sflag, size = 0x8, scoped, tag = 'scoped memory for tpu_custom_call.1']
    #allocation4 [shape = 's32[2]{0}', space=sflag, size = 0x8, scoped, tag = 'scoped memory for tpu_custom_call.1']
    #allocation5 [shape = 'u8[512]{0}', space=vmem, size = 0x400, scoped, tag = 'input window, operand 1, single buffered']
    #allocation6 [shape = 's32[1]{0}', space=sflag, size = 0x4, scoped, tag = 'scoped memory for tpu_custom_call.1']
    #allocation7 [shape = 'u8[512]{0}', space=vmem, size = 0x400, scoped, tag = 'input window, operand 2, single buffered']
    #allocation8 [shape = 'u8[16384]{0}', space=vmem, size = 0x4000, scoped, tag = 'input window, operand 3, single buffered']
    #allocation9 [shape = 's32[1]{0}', space=sflag, size = 0x4, scoped, tag = 'scoped memory for tpu_custom_call.1']
    #allocation10 [shape = 'u8[512]{0}', space=vmem, size = 0x400, scoped, tag = 'input window, operand 4, single buffered']
    #allocation11 [shape = 'u8[8192]{0}', space=vmem, size = 0x2000, scoped, tag = 'output window, operand 0']
    %10 = vsyncpa [#allocation3], 0
    %s11 = scalar_lea.sflag [#allocation3], 1
    %12 = vsyncpa %s11, 0
    %13 = vsyncpa [#allocation6], 0
    %14 = vsyncpa [#allocation9], 0
    %15 = vsyncpa [#allocation4], 0
    %s16 = scalar_lea.sflag [#allocation4], 1
    %17 = vsyncpa %s16, 0
    loop: start=0, step=1, limit=4
    $region2: #{tpu_custom_call.1} parent=1 // loop_pre_header
      _
    $region3: #{tpu_custom_call.1} parent=1 // loop_header
      %s19 = sphi 0, %s23
      %p20 = scmp.ge.s32.totalorder %s19, 4
      %s26 = sphi 0, %s38
      %s27 = sphi 0, %s34
      %s28 = sphi 0, %s26
      %s29 = sphi 0, %s27
      %s30 = sphi 0, %s28
      %s31 = sphi 0, %s29
      %s43 = sphi 0, %s45
      %s46 = sphi 0, %s43
      %s47 = sphi 0, %s46
      %s63 = sphi 0, %s47
      %s67 = sphi 0, %s67
      %s69 = sphi 0, %s67
      %s70 = sphi 0, %s69
      %s84 = sphi 0, %s70
      %s88 = sphi 0, %s88
      %s90 = sphi 0, %s88
      %s91 = sphi 0, %s90
      %s105 = sphi 0, %s91
      %s109 = sphi 0, %s109
      %s111 = sphi 0, %s109
      %s112 = sphi 0, %s111
      %s126 = sphi 0, %s112
      %s130 = sphi 0, %s130
      %s132 = sphi 0, %s130
      %s133 = sphi 0, %s132
      %s147 = sphi 0, %s133
      %s155 = sphi 0, %s157
      %s158 = sphi 0, %s155
      %s159 = sphi 0, %s158
      %s175 = sphi 0, %s159
    $region4: #{tpu_custom_call.1} parent=1 // loop_header_branch
      %22 = sbr.rel (%p20) target = $region8
    $region5: #{tpu_custom_call.1} parent=1 // loop_body
      %s24 = ssub.s32 %s19, 1
      %s25 = ssub.s32 %s19, 2
      %s32 = sadd.s32 1, %s27
      %p33 = scmp.ge.s32.totalorder %s32, 1
      %s34 = scalar_select %p33, 0, %s32
      %s35 = sadd.s32 1, %s26
      %s36 = scalar_select %p33, %s35, %s26
      %p37 = scmp.ge.s32.totalorder %s36, 2
      %s38 = scalar_select %p37, 0, %s36
      %s39 = ssub.s32 %s26, %s38
      %s40 = ssub.s32 %s27, %s34
      %s41 = sor.u32 %s39, %s40
      %p42 = scmp.eq.s32.totalorder %s41, 0
      %s44 = sadd.s32 %s43, 1
      %s45 = scalar_select %p42, %s43, %s44
      %p48 = pneg %p42
      %p49 = scmp.eq.s32.totalorder %s19, 1
      %p50 = por %p48, %p49
      %p51 = scmp.ne.s32.totalorder %s43, %s46
      %p52 = scmp.eq.s32.totalorder %s19, 0
      %p53 = por %p51, %p52
      %p54 = scmp.ne.s32.totalorder %s43, %s46
      %p55 = scmp.eq.s32.totalorder %s24, 1
      %p56 = por %p54, %p55
      %p57 = scmp.ne.s32.totalorder %s46, %s47
      %p58 = scmp.eq.s32.totalorder %s24, 0
      %p59 = por %p57, %p58
      %p60 = scmp.ne.s32.totalorder %s46, %s47
      %p61 = scmp.eq.s32.totalorder %s25, 1
      %p62 = por %p60, %p61
      %p64 = scmp.ne.s32.totalorder %s47, %s63
      %p65 = scmp.eq.s32.totalorder %s25, 0
      %p66 = por %p64, %p65
      %s68 = sadd.s32 %s67, 1
      %p71 = scmp.eq.s32.totalorder %s19, 1
      %p72 = scmp.ne.s32.totalorder %s67, %s69
      %p73 = scmp.eq.s32.totalorder %s19, 0
      %p74 = por %p72, %p73
      %p75 = scmp.ne.s32.totalorder %s67, %s69
      %p76 = scmp.eq.s32.totalorder %s24, 1
      %p77 = por %p75, %p76
      %p78 = scmp.ne.s32.totalorder %s69, %s70
      %p79 = scmp.eq.s32.totalorder %s24, 0
      %p80 = por %p78, %p79
      %p81 = scmp.ne.s32.totalorder %s69, %s70
      %p82 = scmp.eq.s32.totalorder %s25, 1
      %p83 = por %p81, %p82
      %p85 = scmp.ne.s32.totalorder %s70, %s84
      %p86 = scmp.eq.s32.totalorder %s25, 0
      %p87 = por %p85, %p86
      %s89 = sadd.s32 %s88, 1
      %p92 = scmp.eq.s32.totalorder %s19, 1
      %p93 = scmp.ne.s32.totalorder %s88, %s90
      %p94 = scmp.eq.s32.totalorder %s19, 0
      %p95 = por %p93, %p94
      %p96 = scmp.ne.s32.totalorder %s88, %s90
      %p97 = scmp.eq.s32.totalorder %s24, 1
      %p98 = por %p96, %p97
      %p99 = scmp.ne.s32.totalorder %s90, %s91
      %p100 = scmp.eq.s32.totalorder %s24, 0
      %p101 = por %p99, %p100
      %p102 = scmp.ne.s32.totalorder %s90, %s91
      %p103 = scmp.eq.s32.totalorder %s25, 1
      %p104 = por %p102, %p103
      %p106 = scmp.ne.s32.totalorder %s91, %s105
      %p107 = scmp.eq.s32.totalorder %s25, 0
      %p108 = por %p106, %p107
      %s110 = sadd.s32 %s109, 1
      %p113 = scmp.eq.s32.totalorder %s19, 1
      %p114 = scmp.ne.s32.totalorder %s109, %s111
      %p115 = scmp.eq.s32.totalorder %s19, 0
      %p116 = por %p114, %p115
      %p117 = scmp.ne.s32.totalorder %s109, %s111
      %p118 = scmp.eq.s32.totalorder %s24, 1
      %p119 = por %p117, %p118
      %p120 = scmp.ne.s32.totalorder %s111, %s112
      %p121 = scmp.eq.s32.totalorder %s24, 0
      %p122 = por %p120, %p121
      %p123 = scmp.ne.s32.totalorder %s111, %s112
      %p124 = scmp.eq.s32.totalorder %s25, 1
      %p125 = por %p123, %p124
      %p127 = scmp.ne.s32.totalorder %s112, %s126
      %p128 = scmp.eq.s32.totalorder %s25, 0
      %p129 = por %p127, %p128
      %s131 = sadd.s32 %s130, 1
      %p134 = scmp.eq.s32.totalorder %s19, 1
      %p135 = scmp.ne.s32.totalorder %s130, %s132
      %p136 = scmp.eq.s32.totalorder %s19, 0
      %p137 = por %p135, %p136
      %p138 = scmp.ne.s32.totalorder %s130, %s132
      %p139 = scmp.eq.s32.totalorder %s24, 1
      %p140 = por %p138, %p139
      %p141 = scmp.ne.s32.totalorder %s132, %s133
      %p142 = scmp.eq.s32.totalorder %s24, 0
      %p143 = por %p141, %p142
      %p144 = scmp.ne.s32.totalorder %s132, %s133
      %p145 = scmp.eq.s32.totalorder %s25, 1
      %p146 = por %p144, %p145
      %p148 = scmp.ne.s32.totalorder %s133, %s147
      %p149 = scmp.eq.s32.totalorder %s25, 0
      %p150 = por %p148, %p149
      %s151 = ssub.s32 %s26, %s38
      %s152 = ssub.s32 %s27, %s34
      %s153 = sor.u32 %s151, %s152
      %p154 = scmp.eq.s32.totalorder %s153, 0
      %s156 = sadd.s32 %s155, 1
      %s157 = scalar_select %p154, %s155, %s156
      %p160 = pneg %p154
      %p161 = scmp.eq.s32.totalorder %s19, 1
      %p162 = por %p160, %p161
      %p163 = scmp.ne.s32.totalorder %s155, %s158
      %p164 = scmp.eq.s32.totalorder %s19, 0
      %p165 = por %p163, %p164
      %p166 = scmp.ne.s32.totalorder %s155, %s158
      %p167 = scmp.eq.s32.totalorder %s24, 1
      %p168 = por %p166, %p167
      %p169 = scmp.ne.s32.totalorder %s158, %s159
      %p170 = scmp.eq.s32.totalorder %s24, 0
      %p171 = por %p169, %p170
      %p172 = scmp.ne.s32.totalorder %s158, %s159
      %p173 = scmp.eq.s32.totalorder %s25, 1
      %p174 = por %p172, %p173
      %p176 = scmp.ne.s32.totalorder %s159, %s175
      %p177 = scmp.eq.s32.totalorder %s25, 0
      %p178 = por %p176, %p177
      %p179 = scmp.le.s32.totalorder 1, %s19
      %p180 = scmp.lt.s32.totalorder %s19, 3
      %p181 = pnand %p179, %p180
      %p182 = pneg %p181
      // Predicated region
      $region9: #{tpu_custom_call.1} parent=5 // pred_check
        _
      $region10: #{tpu_custom_call.1} parent=5 // pred_check_branch
        %184 = sbr.rel (%p181) target = $region12
      $region11: #{tpu_custom_call.1} parent=5 // pred_region
        %s185 = ssub.s32 %s19, 1
        // Predicated region
        $region13: #{tpu_custom_call.1} parent=11 // pred_check
          %p186 = pneg %p80
        $region14: #{tpu_custom_call.1} parent=11 // pred_check_branch
          %188 = sbr.rel (%p186) target = $region16
        $region15: #{tpu_custom_call.1} parent=11 // pred_region
          %s190 = ssub.s32 16, 16
          %191 = vsyncadd [#allocation6], %s190
          %s193 = sshll.u32 [#allocation5], 4
          %s194 = int_to_ptr.vmem [resolvable:$true] %s193
          %196 = dma.hbm_to_vmem [thread:$0]  %s1, 16, %s194, [#allocation6]
        $region16: #{tpu_custom_call.1} parent=11 // pred_fallthru
          _
        // Predicated region
        $region17: #{tpu_custom_call.1} parent=11 // pred_check
          %p197 = pneg %p101
        $region18: #{tpu_custom_call.1} parent=11 // pred_check_branch
          %199 = sbr.rel (%p197) target = $region20
        $region19: #{tpu_custom_call.1} parent=11 // pred_region
          %s201 = ssub.s32 16, 16
          %202 = vsyncadd [#allocation6], %s201
          %s204 = sshll.u32 [#allocation7], 4
          %s205 = int_to_ptr.vmem [resolvable:$true] %s204
          %207 = dma.hbm_to_vmem [thread:$0]  %s2, 16, %s205, [#allocation6]
        $region20: #{tpu_custom_call.1} parent=11 // pred_fallthru
          _
        // Predicated region
        $region21: #{tpu_custom_call.1} parent=11 // pred_check
          %p208 = pneg %p122
        $region22: #{tpu_custom_call.1} parent=11 // pred_check_branch
          %210 = sbr.rel (%p208) target = $region24
        $region23: #{tpu_custom_call.1} parent=11 // pred_region
          %s212 = ssub.s32 512, 512
          %213 = vsyncadd [#allocation9], %s212
          %s214 = sshll.u32 [#allocation8], 4
          %s215 = int_to_ptr.vmem [resolvable:$true] %s214
          %220 = dma.hbm_to_vmem [thread:$0]  %s3, 512, %s215, [#allocation9], 128, 128, 8
        $region24: #{tpu_custom_call.1} parent=11 // pred_fallthru
          _
        // Predicated region
        $region25: #{tpu_custom_call.1} parent=11 // pred_check
          %p221 = pneg %p143
        $region26: #{tpu_custom_call.1} parent=11 // pred_check_branch
          %223 = sbr.rel (%p221) target = $region28
        $region27: #{tpu_custom_call.1} parent=11 // pred_region
          %s225 = ssub.s32 16, 16
          %226 = vsyncadd [#allocation9], %s225
          %s228 = sshll.u32 [#allocation10], 4
          %s229 = int_to_ptr.vmem [resolvable:$true] %s228
          %231 = dma.hbm_to_vmem [thread:$0]  %s4, 16, %s229, [#allocation9]
        $region28: #{tpu_custom_call.1} parent=11 // pred_fallthru
          _
      $region12: #{tpu_custom_call.1} parent=5 // pred_fallthru
        _
      %p232 = scmp.lt.s32.totalorder %s19, 2
      // Predicated region
      $region29: #{tpu_custom_call.1} parent=5 // pred_check
        %p233 = pneg %p232
      $region30: #{tpu_custom_call.1} parent=5 // pred_check_branch
        %235 = sbr.rel (%p233) target = $region32
      $region31: #{tpu_custom_call.1} parent=5 // pred_region
        // Predicated region
        $region33: #{tpu_custom_call.1} parent=31 // pred_check
          %p236 = pneg %p53
        $region34: #{tpu_custom_call.1} parent=31 // pred_check_branch
          %238 = sbr.rel (%p236) target = $region36
        $region35: #{tpu_custom_call.1} parent=31 // pred_region
          %s239 = sand.u32 %s43, 1
          %s240 = scalar_lea.sflag [#allocation3], %s239
          %s241 = sand.u32 %s43, 1
          %s242 = smul.addr %s241, 8
          %s243 = scalar_lea.vmem [#allocation2], %s242
          %s245 = ssub.s32 128, 128
          %246 = vsyncadd %s240, %s245
          %s247 = sadd.s32 %s27, %s26
          %s248 = smul.addr %s247, 128
          %s249 = scalar_lea.hbm %s0, %s248
          %s251 = sshll.u32 %s243, 4
          %s252 = int_to_ptr.vmem [resolvable:$true] %s251
          %254 = dma.hbm_to_vmem [thread:$0]  %s249, 128, %s252, %s240
        $region36: #{tpu_custom_call.1} parent=31 // pred_fallthru
          _
      $region32: #{tpu_custom_call.1} parent=5 // pred_fallthru
        _
      %p255 = scmp.le.s32.totalorder 1, %s19
      %p256 = scmp.lt.s32.totalorder %s19, 3
      %p257 = pnand %p255, %p256
      %p258 = pneg %p257
      // Predicated region
      $region37: #{tpu_custom_call.1} parent=5 // pred_check
        _
      $region38: #{tpu_custom_call.1} parent=5 // pred_check_branch
        %260 = sbr.rel (%p257) target = $region40
      $region39: #{tpu_custom_call.1} parent=5 // pred_region
        %s261 = ssub.s32 %s19, 1
        %s262 = sand.u32 %s46, 1
        %s263 = scalar_lea.sflag [#allocation3], %s262
        %s264 = sand.u32 %s46, 1
        %s265 = smul.addr %s264, 8
        %s266 = scalar_lea.vmem [#allocation2], %s265
        // Predicated region
        $region41: #{tpu_custom_call.1} parent=39 // pred_check
          %p267 = pneg %p59
        $region42: #{tpu_custom_call.1} parent=39 // pred_check_branch
          %269 = sbr.rel (%p267) target = $region44
        $region43: #{tpu_custom_call.1} parent=39 // pred_region
          %270 = dma.done %s263, 128
        $region44: #{tpu_custom_call.1} parent=39 // pred_fallthru
          _
        // Predicated region
        $region45: #{tpu_custom_call.1} parent=39 // pred_check
          %p271 = pneg %p80
        $region46: #{tpu_custom_call.1} parent=39 // pred_check_branch
          %273 = sbr.rel (%p271) target = $region48
        $region47: #{tpu_custom_call.1} parent=39 // pred_region
          %274 = dma.done [#allocation6], 16
        $region48: #{tpu_custom_call.1} parent=39 // pred_fallthru
          _
        // Predicated region
        $region49: #{tpu_custom_call.1} parent=39 // pred_check
          %p275 = pneg %p101
        $region50: #{tpu_custom_call.1} parent=39 // pred_check_branch
          %277 = sbr.rel (%p275) target = $region52
        $region51: #{tpu_custom_call.1} parent=39 // pred_region
          %278 = dma.done [#allocation6], 16
        $region52: #{tpu_custom_call.1} parent=39 // pred_fallthru
          _
        // Predicated region
        $region53: #{tpu_custom_call.1} parent=39 // pred_check
          %p279 = pneg %p122
        $region54: #{tpu_custom_call.1} parent=39 // pred_check_branch
          %281 = sbr.rel (%p279) target = $region56
        $region55: #{tpu_custom_call.1} parent=39 // pred_region
          %282 = dma.done [#allocation9], 512
        $region56: #{tpu_custom_call.1} parent=39 // pred_fallthru
          _
        // Predicated region
        $region57: #{tpu_custom_call.1} parent=39 // pred_check
          %p283 = pneg %p143
        $region58: #{tpu_custom_call.1} parent=39 // pred_check_branch
          %285 = sbr.rel (%p283) target = $region60
        $region59: #{tpu_custom_call.1} parent=39 // pred_region
          %286 = dma.done [#allocation9], 16
        $region60: #{tpu_custom_call.1} parent=39 // pred_fallthru
          _
        %s287 = sand.u32 %s46, 1
        %s288 = scalar_lea.sflag [#allocation3], %s287
        %s289 = sand.u32 %s46, 1
        %s290 = smul.addr %s289, 8
        %s291 = scalar_lea.vmem [#allocation2], %s290
        %p292 = pneg %p59
        %p293 = pneg %p56
        %p294 = pneg %p80
        %p295 = pneg %p77
        %p296 = pneg %p101
        %p297 = pneg %p98
        %p298 = pneg %p122
        %p299 = pneg %p119
        %p300 = pneg %p143
        %p301 = pneg %p140
        %p302 = pneg %p171
        %p303 = pneg %p168
        %s304 = sand.u32 %s158, 1
        %s305 = scalar_lea.sflag [#allocation4], %s304
        %s306 = sand.u32 %s158, 1
        %s307 = smul.addr %s306, 8
        %s308 = scalar_lea.vmem [#allocation11], %s307
        %v309 = vld [vmem:[%s266] sm:$0xff]
        %v310 = vld [vmem:[#allocation5] sm:$0x1]
        %v311 = vld [vmem:[#allocation7] sm:$0x1]
        %vm312 = vcmask 261120
        %v313 = vsel %vm312, %v309, 0.0
        %314 = vadd.xlane.f32.xlu0 %v313
        %v315 = vpop.xlane.xlu0 %314
        %v316 = vrcp.pop 32.0
        %v317 = vmul.f32 %v315, %v316
        %v318 = vsub.f32 %v309, %v317
        %v319 = vmul.f32 %v318, %v318
        %v320 = vsel %vm312, %v319, 0.0
        %321 = vadd.xlane.f32.xlu0 %v320
        %v322 = vpop.xlane.xlu0 %321
        %v323 = vmul.f32 %v322, %v316
        %v324 = vadd.f32 %v323, 1e-05
        %v325 = vrsqrt.pop %v324
        %v326 = vmul.f32 %v318, %v325
        %v328 = vlaneseq
        %v329 = vshrl.u32 %v328, 7
        %v330 = vsub.s32 0, %v329
        %v331 = vrot.slane %v310, %v330
        %v333 = vmul.f32 %v326, %v331
        %v335 = vlaneseq
        %v336 = vshrl.u32 %v335, 7
        %v337 = vsub.s32 0, %v336
        %v338 = vrot.slane %v311, %v337
        %v340 = vadd.f32 %v333, %v338
        %v341 = vld [vmem:[#allocation8] sm:$0xff]
        %v342 = vld [vmem:[#allocation8 + $0x8] sm:$0xff]
        %v343 = vld [vmem:[#allocation8 + $0x10] sm:$0xff]
        %v344 = vld [vmem:[#allocation8 + $0x18] sm:$0xff]
        %v345 = vld [vmem:[#allocation10] sm:$0x1]
        %v347 = vlaneseq
        %v348 = vshrl.u32 %v347, 7
        %v349 = vsub.s32 0, %v348
        %v350 = vrot.slane %v345, %v349
        %v353 = vsel %vm312, %v340, 0
        %355 = vmatprep.subr.mxu0 0.0
        %356 = vmatpush1.msra.mxu0 %v341
        %357 = vmatprep.subr.mxu0 0.0
        %358 = vmatpush1.msra.mxu0 %v342
        %359 = vmatprep.subr.mxu0 0.0
        %360 = vmatpush1.msra.mxu0 %v343
        %361 = vmatprep.subr.mxu0 0.0
        %362 = vmatpush1.msra.mxu0 %v344
        %363 = vmatprep.subr.mxu0 0.0
        %364 = vmatpush1.msra.mxu0 0.0
        %365 = vmatprep.subr.mxu0 0.0
        %366 = vmatpush1.msra.mxu0 0.0
        %367 = vmatprep.subr.mxu0 0.0
        %368 = vmatpush1.msra.mxu0 0.0
        %369 = vmatprep.subr.mxu0 0.0
        %370 = vmatpush1.msra.mxu0 0.0
        %371 = vmatprep.subr.mxu0 0.0
        %372 = vmatpush1.msra.mxu0 0.0
        %373 = vmatprep.subr.mxu0 0.0
        %374 = vmatpush1.msra.mxu0 0.0
        %375 = vmatprep.subr.mxu0 0.0
        %376 = vmatpush1.msra.mxu0 0.0
        %377 = vmatprep.subr.mxu0 0.0
        %378 = vmatpush1.msra.mxu0 0.0
        %379 = vmatprep.subr.mxu0 0.0
        %380 = vmatpush1.msra.mxu0 0.0
        %381 = vmatprep.subr.mxu0 0.0
        %382 = vmatpush1.msra.mxu0 0.0
        %383 = vmatprep.subr.mxu0 0.0
        %384 = vmatpush1.msra.mxu0 0.0
        %385 = vmatprep.subr.mxu0 0.0
        %386 = vmatpush1.msra.mxu0 0.0
        %387 = vmatprep.subr.mxu0 0.0
        %388 = vmatpush1.msra.mxu0 0.0
        %389 = vmatprep.subr.mxu0 0.0
        %390 = vmatpush1.msra.mxu0 0.0
        %391 = vmatprep.subr.mxu0 0.0
        %392 = vmatpush1.msra.mxu0 0.0
        %393 = vmatprep.subr.mxu0 0.0
        %394 = vmatpush1.msra.mxu0 0.0
        %395 = vmatprep.subr.mxu0 0.0
        %396 = vmatpush1.msra.mxu0 0.0
        %397 = vmatprep.subr.mxu0 0.0
        %398 = vmatpush1.msra.mxu0 0.0
        %399 = vmatprep.subr.mxu0 0.0
        %400 = vmatpush1.msra.mxu0 0.0
        %401 = vmatprep.subr.mxu0 0.0
        %402 = vmatpush1.msra.mxu0 0.0
        %403 = vmatprep.subr.mxu0 0.0
        %404 = vmatpush1.msra.mxu0 0.0
        %405 = vmatprep.subr.mxu0 0.0
        %406 = vmatpush1.msra.mxu0 0.0
        %407 = vmatprep.subr.mxu0 0.0
        %408 = vmatpush1.msra.mxu0 0.0
        %409 = vmatprep.subr.mxu0 0.0
        %410 = vmatpush1.msra.mxu0 0.0
        %411 = vmatprep.subr.mxu0 0.0
        %412 = vmatpush1.msra.mxu0 0.0
        %413 = vmatprep.subr.mxu0 0.0
        %414 = vmatpush1.msra.mxu0 0.0
        %415 = vmatprep.subr.mxu0 0.0
        %416 = vmatpush1.msra.mxu0 0.0
        %417 = vmatprep.subr.mxu0 0.0
        %418 = vmatpush1.msra.mxu0 0.0
        %419 = vmatprep.mubr.f32.mxu0 0.0
        %420 = vmatmul.mubr.f32.gmra.mrb[0].mxu0 %v353
        %v421 = vpop.f32.mrb[0].mxu0
        %v422 = vadd.f32 %v350, %v421
        %v423 = vpop.f32.mrb[0].mxu0
        %424 = vdwg.mxu0
        %vm425 = vcmask 785408
        %426 = vst.msk [vmem:[%s308] sm:$0xff] %vm425, %v422
        %s427 = sand.u32 %s158, 1
        %s428 = scalar_lea.sflag [#allocation4], %s427
        %s429 = sand.u32 %s158, 1
        %s430 = smul.addr %s429, 8
        %s431 = scalar_lea.vmem [#allocation11], %s430
        // Predicated region
        $region61: #{tpu_custom_call.1} parent=39 // pred_check
          %p432 = pneg %p168
        $region62: #{tpu_custom_call.1} parent=39 // pred_check_branch
          %434 = sbr.rel (%p432) target = $region64
        $region63: #{tpu_custom_call.1} parent=39 // pred_region
          %s436 = ssub.s32 128, 128
          %437 = vsyncadd %s428, %s436
          %s438 = sadd.s32 %s29, %s28
          %s439 = smul.addr %s438, 128
          %s440 = scalar_lea.hbm %s5, %s439
          %s442 = sshll.u32 %s431, 4
          %s443 = int_to_ptr.vmem [resolvable:$true] %s442
          %445 = dma.vmem_to_hbm [thread:$0]  %s443, 128, %s440, %s428
        $region64: #{tpu_custom_call.1} parent=39 // pred_fallthru
          _
      $region40: #{tpu_custom_call.1} parent=5 // pred_fallthru
        _
      %p446 = scmp.le.s32.totalorder 2, %s19
      // Predicated region
      $region65: #{tpu_custom_call.1} parent=5 // pred_check
        %p447 = pneg %p446
      $region66: #{tpu_custom_call.1} parent=5 // pred_check_branch
        %449 = sbr.rel (%p447) target = $region68
      $region67: #{tpu_custom_call.1} parent=5 // pred_region
        %s450 = ssub.s32 %s19, 2
        // Predicated region
        $region69: #{tpu_custom_call.1} parent=67 // pred_check
          %p451 = pneg %p174
        $region70: #{tpu_custom_call.1} parent=67 // pred_check_branch
          %453 = sbr.rel (%p451) target = $region72
        $region71: #{tpu_custom_call.1} parent=67 // pred_region
          %s454 = sand.u32 %s159, 1
          %s455 = scalar_lea.sflag [#allocation4], %s454
          %s456 = sand.u32 %s159, 1
          %s457 = smul.addr %s456, 8
          %s458 = scalar_lea.vmem [#allocation11], %s457
          %459 = dma.done %s455, 128
        $region72: #{tpu_custom_call.1} parent=67 // pred_fallthru
          _
      $region68: #{tpu_custom_call.1} parent=5 // pred_fallthru
        _
    $region6: #{tpu_custom_call.1} parent=1 // loop_footer
      %s23 = sadd.s32 1, %s19
    $region7: #{tpu_custom_call.1} parent=1 // loop_footer_branch
      %18 = sbr.rel target = $region3
    $region8: #{tpu_custom_call.1} parent=1 // loop_exit
      _
    %460 = vsyncpa [#allocation3], 1
    %s461 = scalar_lea.sflag [#allocation3], 1
    %462 = vsyncpa %s461, 1
    %463 = vsyncpa [#allocation6], 1
    %464 = vsyncpa [#allocation9], 1
    %465 = vsyncpa [#allocation4], 1
    %s466 = scalar_lea.sflag [#allocation4], 1
    %467 = vsyncpa %s466, 1

</llo_original>
